<compile_context>
chip_gen: v5e
topology: v5e:2x2
jax: 0.10.0
libtpu: 0.0.40
codegen_flags: <defaults>
</compile_context>

<pallas_src>
import jax
import jax.numpy as jnp
from jax import lax
from jax.experimental import pallas as pl
from jax.experimental.pallas import tpu as pltpu


_LANES = 128  # output lane width: full-lane, unmasked stores


def _make_kernel(tile_b, num_neg, dim):
    """Kernel processing `tile_b` (u, v, negatives) triples per grid step."""
    k_other = 1 + num_neg  # v plus the negatives

    def kernel(u_idx, v_idx, neg_idx, table_ref, out_ref, u_scr, o_scr):
        # u_idx:   (B_pad,)          int32  SMEM (scalar prefetch)
        # v_idx:   (B_pad,)          int32  SMEM
        # neg_idx: (B_pad * N,)      int32  SMEM (flattened)
        # table_ref: (V, D)          f32    VMEM, resident across the whole grid
        # out_ref: (TB, 128)         f32    lane-replicated results for this tile
        # u_scr:   (TB, D)           f32    gathered u embeddings
        # o_scr:   (K*TB, D)         f32    gathered [v, negs] embeddings, k-major
        t = pl.program_id(0)
        base = t * tile_b

        # ---- Gather: (K+1) rows per triple via dynamic row slices; indices in SMEM.
        def gather(i, carry):
            b = base + i
            u_scr[pl.ds(i, 1), :] = table_ref[pl.ds(u_idx[b], 1), :]
            o_scr[pl.ds(i, 1), :] = table_ref[pl.ds(v_idx[b], 1), :]
            for k in range(num_neg):
                row = (k + 1) * tile_b + i
                o_scr[pl.ds(row, 1), :] = table_ref[pl.ds(neg_idx[b * num_neg + k], 1), :]
            return carry

        lax.fori_loop(0, tile_b, gather, 0)

        # ---- Poincare-ball distance, vectorized over the whole tile (VPU/XLU/EUP).
        eps = 1e-7  # clamp ball denominators (norms can approach 1 during training)
        u_all = u_scr[...]                                        # (TB, D)
        sq_u = jnp.sum(u_all * u_all, axis=-1, keepdims=True)     # (TB, 1)
        one_m_u = jnp.maximum(1.0 - sq_u, eps)

        numer = None
        denom = None
        for k in range(k_other):
            o_k = o_scr[pl.ds(k * tile_b, tile_b), :]             # (TB, D), static slice
            sq_o = jnp.sum(o_k * o_k, axis=-1, keepdims=True)     # (TB, 1)
            diff = u_all - o_k
            sq_d = jnp.sum(diff * diff, axis=-1, keepdims=True)   # (TB, 1)
            tt = 2.0 * sq_d / (one_m_u * jnp.maximum(1.0 - sq_o, eps))
            # arccosh(1 + t) = log1p(t + sqrt(t*(t + 2))).  Computing t directly
            # avoids the x*x - 1 cancellation of the naive form.  log(1 + s) is
            # used instead of log1p to stay on guaranteed-lowered elementwise ops;
            # for s -> 0 this loses some relative precision in d (documented).
            ss = tt + jnp.sqrt(tt * (tt + 2.0))
            dd = jnp.log(1.0 + ss)
            ee = jnp.exp(-dd)                                     # (TB, 1)
            if k == 0:
                numer = ee                                        # exp(-d(u, v))
            elif denom is None:
                denom = ee
            else:
                denom = denom + ee                                # sum_i exp(-d(u, neg_i))

        res = numer * pl.reciprocal(denom, approx=True)           # (TB, 1)
        # Lane-replicate so the store is a full, unmasked (TB, 128) vst; the
        # wrapper reads column 0.
        out_ref[...] = jnp.broadcast_to(res, (tile_b, _LANES))

    return kernel


def poincare_forward_batched(u, v, negatives, table, *, tile=128):
    """u, v: (B,) int32; negatives: (B, N) int32; table: (V, D) float32.

    Returns (B,) float32 where row b = exp(-d(u_b, v_b)) / sum_i exp(-d(u_b, neg_bi)).
    """
    u = jnp.asarray(u, jnp.int32).reshape(-1)
    v = jnp.asarray(v, jnp.int32).reshape(-1)
    negatives = jnp.asarray(negatives, jnp.int32)
    if negatives.ndim == 1:
        negatives = negatives[None, :]
    table = jnp.asarray(table)
    if table.dtype != jnp.float32:
        table = table.astype(jnp.float32)

    batch = u.shape[0]
    num_neg = negatives.shape[1]
    vocab, dim = table.shape
    k_other = 1 + num_neg

    # Triples per grid step: lane width (128) for real batches, a single small
    # sublane-aligned tile for tiny ones.
    tile_b = tile if batch >= tile else max(8, -(-batch // 8) * 8)
    num_tiles = -(-batch // tile_b)
    b_pad = num_tiles * tile_b
    pad = b_pad - batch

    # Indices are not bounds-checked inside the kernel (VMEM reads are unchecked),
    # so clip; padded rows use index 0 (valid) and are dropped on return.
    u = jnp.clip(u, 0, vocab - 1)
    v = jnp.clip(v, 0, vocab - 1)
    negatives = jnp.clip(negatives, 0, vocab - 1)
    if pad:
        u = jnp.pad(u, (0, pad))
        v = jnp.pad(v, (0, pad))
        negatives = jnp.pad(negatives, ((0, pad), (0, 0)))
    neg_flat = negatives.reshape(-1)   # 1-D SMEM prefetch (no (B, N) -> (8k, 128) padding)

    # Explicit VMEM budget: the resident table is lane-padded to 128 lanes
    # (~V * 512 B for f32), plus scratch and the double-buffered output block.
    d_pad = -(-dim // _LANES) * _LANES
    need = ((-(-vocab // 8) * 8) * d_pad
            + tile_b * d_pad * (1 + k_other)
            + 2 * tile_b * _LANES) * 4 + (1 << 20)
    vmem_limit = int(max(32 * 1024 * 1024, min(2 * need, 64 * 1024 * 1024)))
    # TODO(synk): for vocabularies where V*512B approaches the VMEM limit, keep the
    # table in HBM (memory_space=pl.ANY) and gather rows per tile with manual
    # double-buffered pltpu.make_async_copy instead of holding it resident.

    kernel = _make_kernel(tile_b, num_neg, dim)
    grid_spec = pltpu.PrefetchScalarGridSpec(
        num_scalar_prefetch=3,                       # u, v, negatives(flat) -> SMEM
        grid=(num_tiles,),
        in_specs=[pl.BlockSpec(memory_space=pltpu.MemorySpace.VMEM)],   # table resident
        out_specs=pl.BlockSpec((tile_b, _LANES), lambda t, u_r, v_r, n_r: (t, 0)),
        scratch_shapes=[
            pltpu.VMEM((tile_b, dim), jnp.float32),
            pltpu.VMEM((k_other * tile_b, dim), jnp.float32),
        ],
    )
    out = pl.pallas_call(
        kernel,
        out_shape=jax.ShapeDtypeStruct((b_pad, _LANES), jnp.float32),
        grid_spec=grid_spec,
        compiler_params=pltpu.CompilerParams(
            dimension_semantics=("parallel",),       # disjoint output tiles (v7x megacore)
            vmem_limit_bytes=vmem_limit,
        ),
    )(u, v, neg_flat, table)
    return out[:batch, 0]


def poincare_forward(u, v, negatives, table):
    """Single (u, v, negatives) triple -- mirrors Model.forward."""
    out = poincare_forward_batched(
        jnp.reshape(u, (1,)), jnp.reshape(v, (1,)),
        jnp.reshape(negatives, (1, -1)), table)
    return out[0]


def _reference_forward(u, v, negatives, table):
    # Pure-JAX reference mirroring the PyTorch module.
    u_emb = table[u][None, :]
    v_emb = table[v][None, :]
    neg_emb = table[negatives]

    def hd(a, b):
        sq_a = jnp.sum(a * a, axis=-1, keepdims=True)
        sq_b = jnp.sum(b * b, axis=-1, keepdims=True)
        sq_d = jnp.sum((a - b) ** 2, axis=-1, keepdims=True)
        x = 1.0 + 2.0 * sq_d / ((1.0 - sq_a) * (1.0 - sq_b))
        return jnp.arccosh(x)

    numer = jnp.exp(-hd(u_emb, v_emb))
    denom = jnp.sum(jnp.exp(-hd(u_emb, neg_emb)))
    return (numer / denom)[0, 0]


# TODO(synk): Model.fit (Riemannian SGD update / metric_tensor / proj) is a
# training loop, not part of the forward pass, and is not implemented as a kernel.

if __name__ == "__main__":
    vocab_size = 32
    embedding_dim = 10
    num_negatives = 8

    key = jax.random.PRNGKey(0)
    k_tab, k_u, k_v, k_n = jax.random.split(key, 4)

    # nn.Embedding weight, uniform in (-0.001, 0.001), deterministic.
    table = jax.random.uniform(
        k_tab, (vocab_size, embedding_dim),
        minval=-0.001, maxval=0.001, dtype=jnp.float32)

    # ---- Single triple (matches Model.forward) ----
    u = jax.random.randint(k_u, (), 0, vocab_size, dtype=jnp.int32)
    v = jax.random.randint(k_v, (), 0, vocab_size, dtype=jnp.int32)
    negatives = jax.random.randint(
        k_n, (num_negatives,), 0, vocab_size, dtype=jnp.int32)

    out = poincare_forward(u, v, negatives, table)
    jax.block_until_ready(out)
    ref = _reference_forward(u, v, negatives, table)
    # Tolerance accounts for the approximate (EUP) reciprocal in the final divide.
    assert jnp.allclose(out, ref, rtol=2e-3, atol=1e-6), (out, ref)

    # ---- Batched: one partial tile (B=4) and a multi-tile batch (B=300) ----
    for batch in (4, 300):
        kb = jax.random.split(jax.random.PRNGKey(batch), 3)
        U = jax.random.randint(kb[0], (batch,), 0, vocab_size, dtype=jnp.int32)
        Vv = jax.random.randint(kb[1], (batch,), 0, vocab_size, dtype=jnp.int32)
        NEGS = jax.random.randint(
            kb[2], (batch, num_negatives), 0, vocab_size, dtype=jnp.int32)

        out_b = poincare_forward_batched(U, Vv, NEGS, table)
        jax.block_until_ready(out_b)
        ref_b = jax.vmap(
            lambda uu, vv, nn: _reference_forward(uu, vv, nn, table))(U, Vv, NEGS)
        assert jnp.allclose(out_b, ref_b, rtol=2e-3, atol=1e-6), (out_b, ref_b)

    print("KERNEL_OK")
</pallas_src>

<mosaic_0001>
module attributes {stable_mosaic.version = 11 : i64} {
  func.func @kernel(%arg0: i32, %arg1: memref<8xi32, #tpu.memory_space<smem>>, %arg2: memref<8xi32, #tpu.memory_space<smem>>, %arg3: memref<64xi32, #tpu.memory_space<smem>>, %arg4: memref<32x10xf32, #tpu.memory_space<vmem>>, %arg5: memref<8x128xf32, #tpu.memory_space<vmem>>, %arg6: memref<8x10xf32, #tpu.memory_space<vmem>>, %arg7: memref<72x10xf32, #tpu.memory_space<vmem>>) attributes {dimension_semantics = [#tpu.dimension_semantics<parallel>], iteration_bounds = array<i64: 1>, scalar_prefetch = 3 : i64, scratch_operands = 2 : i64, tpu.core_type = #tpu.core_type<tc>, window_params = [{pipeline_mode = #tpu.pipeline_mode<synchronous>, transform_indices = @transform_0, window_bounds = array<i64: 32, 10>}, {transform_indices = @transform_1, window_bounds = array<i64: 8, 128>}]} {
    %c8_i32 = arith.constant 8 : i32
    %0 = arith.muli %arg0, %c8_i32 : i32
    %c0_i32 = arith.constant 0 : i32
    %c8_i32_0 = arith.constant 8 : i32
    %1 = arith.addi %c0_i32, %c8_i32_0 : i32
    %c1_i32 = arith.constant 1 : i32
    scf.for %arg8 = %c0_i32 to %1 step %c1_i32  : i32 {
      %265 = arith.addi %0, %arg8 : i32
      %266 = arith.index_cast %265 : i32 to index
      %267 = memref.load %arg1[%266] : memref<8xi32, #tpu.memory_space<smem>>
      %268 = arith.index_cast %267 : i32 to index
      %c0_89 = arith.constant 0 : index
      %269 = vector.load %arg4[%268, %c0_89] : memref<32x10xf32, #tpu.memory_space<vmem>>, vector<1x10xf32>
      %270 = arith.index_cast %arg8 : i32 to index
      %c0_90 = arith.constant 0 : index
      %271 = vector.load %arg6[%270, %c0_90] : memref<8x10xf32, #tpu.memory_space<vmem>>, vector<1x10xf32>
      tpu.vector_store %arg6[%270, %c0_90], %269 {strides = array<i32>} : memref<8x10xf32, #tpu.memory_space<vmem>>, vector<1x10xf32>,
      %272 = arith.index_cast %265 : i32 to index
      %273 = memref.load %arg2[%272] : memref<8xi32, #tpu.memory_space<smem>>
      %274 = arith.index_cast %273 : i32 to index
      %c0_91 = arith.constant 0 : index
      %275 = vector.load %arg4[%274, %c0_91] : memref<32x10xf32, #tpu.memory_space<vmem>>, vector<1x10xf32>
      %276 = arith.index_cast %arg8 : i32 to index
      %c0_92 = arith.constant 0 : index
      %277 = vector.load %arg7[%276, %c0_92] : memref<72x10xf32, #tpu.memory_space<vmem>>, vector<1x10xf32>
      tpu.vector_store %arg7[%276, %c0_92], %275 {strides = array<i32>} : memref<72x10xf32, #tpu.memory_space<vmem>>, vector<1x10xf32>,
      %c8_i32_93 = arith.constant 8 : i32
      %278 = arith.addi %c8_i32_93, %arg8 : i32
      %c8_i32_94 = arith.constant 8 : i32
      %279 = arith.muli %265, %c8_i32_94 : i32
      %c0_i32_95 = arith.constant 0 : i32
      %280 = arith.addi %279, %c0_i32_95 : i32
      %281 = arith.index_cast %280 : i32 to index
      %282 = memref.load %arg3[%281] : memref<64xi32, #tpu.memory_space<smem>>
      %283 = arith.index_cast %282 : i32 to index
      %c0_96 = arith.constant 0 : index
      %284 = vector.load %arg4[%283, %c0_96] : memref<32x10xf32, #tpu.memory_space<vmem>>, vector<1x10xf32>
      %285 = arith.index_cast %278 : i32 to index
      %c0_97 = arith.constant 0 : index
      %286 = vector.load %arg7[%285, %c0_97] : memref<72x10xf32, #tpu.memory_space<vmem>>, vector<1x10xf32>
      tpu.vector_store %arg7[%285, %c0_97], %284 {strides = array<i32>} : memref<72x10xf32, #tpu.memory_space<vmem>>, vector<1x10xf32>,
      %c16_i32 = arith.constant 16 : i32
      %287 = arith.addi %c16_i32, %arg8 : i32
      %c8_i32_98 = arith.constant 8 : i32
      %288 = arith.muli %265, %c8_i32_98 : i32
      %c1_i32_99 = arith.constant 1 : i32
      %289 = arith.addi %288, %c1_i32_99 : i32
      %290 = arith.index_cast %289 : i32 to index
      %291 = memref.load %arg3[%290] : memref<64xi32, #tpu.memory_space<smem>>
      %292 = arith.index_cast %291 : i32 to index
      %c0_100 = arith.constant 0 : index
      %293 = vector.load %arg4[%292, %c0_100] : memref<32x10xf32, #tpu.memory_space<vmem>>, vector<1x10xf32>
      %294 = arith.index_cast %287 : i32 to index
      %c0_101 = arith.constant 0 : index
      %295 = vector.load %arg7[%294, %c0_101] : memref<72x10xf32, #tpu.memory_space<vmem>>, vector<1x10xf32>
      tpu.vector_store %arg7[%294, %c0_101], %293 {strides = array<i32>} : memref<72x10xf32, #tpu.memory_space<vmem>>, vector<1x10xf32>,
      %c24_i32 = arith.constant 24 : i32
      %296 = arith.addi %c24_i32, %arg8 : i32
      %c8_i32_102 = arith.constant 8 : i32
      %297 = arith.muli %265, %c8_i32_102 : i32
      %c2_i32 = arith.constant 2 : i32
      %298 = arith.addi %297, %c2_i32 : i32
      %299 = arith.index_cast %298 : i32 to index
      %300 = memref.load %arg3[%299] : memref<64xi32, #tpu.memory_space<smem>>
      %301 = arith.index_cast %300 : i32 to index
      %c0_103 = arith.constant 0 : index
      %302 = vector.load %arg4[%301, %c0_103] : memref<32x10xf32, #tpu.memory_space<vmem>>, vector<1x10xf32>
      %303 = arith.index_cast %296 : i32 to index
      %c0_104 = arith.constant 0 : index
      %304 = vector.load %arg7[%303, %c0_104] : memref<72x10xf32, #tpu.memory_space<vmem>>, vector<1x10xf32>
      tpu.vector_store %arg7[%303, %c0_104], %302 {strides = array<i32>} : memref<72x10xf32, #tpu.memory_space<vmem>>, vector<1x10xf32>,
      %c32_i32 = arith.constant 32 : i32
      %305 = arith.addi %c32_i32, %arg8 : i32
      %c8_i32_105 = arith.constant 8 : i32
      %306 = arith.muli %265, %c8_i32_105 : i32
      %c3_i32 = arith.constant 3 : i32
      %307 = arith.addi %306, %c3_i32 : i32
      %308 = arith.index_cast %307 : i32 to index
      %309 = memref.load %arg3[%308] : memref<64xi32, #tpu.memory_space<smem>>
      %310 = arith.index_cast %309 : i32 to index
      %c0_106 = arith.constant 0 : index
      %311 = vector.load %arg4[%310, %c0_106] : memref<32x10xf32, #tpu.memory_space<vmem>>, vector<1x10xf32>
      %312 = arith.index_cast %305 : i32 to index
      %c0_107 = arith.constant 0 : index
      %313 = vector.load %arg7[%312, %c0_107] : memref<72x10xf32, #tpu.memory_space<vmem>>, vector<1x10xf32>
      tpu.vector_store %arg7[%312, %c0_107], %311 {strides = array<i32>} : memref<72x10xf32, #tpu.memory_space<vmem>>, vector<1x10xf32>,
      %c40_i32 = arith.constant 40 : i32
      %314 = arith.addi %c40_i32, %arg8 : i32
      %c8_i32_108 = arith.constant 8 : i32
      %315 = arith.muli %265, %c8_i32_108 : i32
      %c4_i32 = arith.constant 4 : i32
      %316 = arith.addi %315, %c4_i32 : i32
      %317 = arith.index_cast %316 : i32 to index
      %318 = memref.load %arg3[%317] : memref<64xi32, #tpu.memory_space<smem>>
      %319 = arith.index_cast %318 : i32 to index
      %c0_109 = arith.constant 0 : index
      %320 = vector.load %arg4[%319, %c0_109] : memref<32x10xf32, #tpu.memory_space<vmem>>, vector<1x10xf32>
      %321 = arith.index_cast %314 : i32 to index
      %c0_110 = arith.constant 0 : index
      %322 = vector.load %arg7[%321, %c0_110] : memref<72x10xf32, #tpu.memory_space<vmem>>, vector<1x10xf32>
      tpu.vector_store %arg7[%321, %c0_110], %320 {strides = array<i32>} : memref<72x10xf32, #tpu.memory_space<vmem>>, vector<1x10xf32>,
      %c48_i32 = arith.constant 48 : i32
      %323 = arith.addi %c48_i32, %arg8 : i32
      %c8_i32_111 = arith.constant 8 : i32
      %324 = arith.muli %265, %c8_i32_111 : i32
      %c5_i32 = arith.constant 5 : i32
      %325 = arith.addi %324, %c5_i32 : i32
      %326 = arith.index_cast %325 : i32 to index
      %327 = memref.load %arg3[%326] : memref<64xi32, #tpu.memory_space<smem>>
      %328 = arith.index_cast %327 : i32 to index
      %c0_112 = arith.constant 0 : index
      %329 = vector.load %arg4[%328, %c0_112] : memref<32x10xf32, #tpu.memory_space<vmem>>, vector<1x10xf32>
      %330 = arith.index_cast %323 : i32 to index
      %c0_113 = arith.constant 0 : index
      %331 = vector.load %arg7[%330, %c0_113] : memref<72x10xf32, #tpu.memory_space<vmem>>, vector<1x10xf32>
      tpu.vector_store %arg7[%330, %c0_113], %329 {strides = array<i32>} : memref<72x10xf32, #tpu.memory_space<vmem>>, vector<1x10xf32>,
      %c56_i32 = arith.constant 56 : i32
      %332 = arith.addi %c56_i32, %arg8 : i32
      %c8_i32_114 = arith.constant 8 : i32
      %333 = arith.muli %265, %c8_i32_114 : i32
      %c6_i32 = arith.constant 6 : i32
      %334 = arith.addi %333, %c6_i32 : i32
      %335 = arith.index_cast %334 : i32 to index
      %336 = memref.load %arg3[%335] : memref<64xi32, #tpu.memory_space<smem>>
      %337 = arith.index_cast %336 : i32 to index
      %c0_115 = arith.constant 0 : index
      %338 = vector.load %arg4[%337, %c0_115] : memref<32x10xf32, #tpu.memory_space<vmem>>, vector<1x10xf32>
      %339 = arith.index_cast %332 : i32 to index
      %c0_116 = arith.constant 0 : index
      %340 = vector.load %arg7[%339, %c0_116] : memref<72x10xf32, #tpu.memory_space<vmem>>, vector<1x10xf32>
      tpu.vector_store %arg7[%339, %c0_116], %338 {strides = array<i32>} : memref<72x10xf32, #tpu.memory_space<vmem>>, vector<1x10xf32>,
      %c64_i32 = arith.constant 64 : i32
      %341 = arith.addi %c64_i32, %arg8 : i32
      %c8_i32_117 = arith.constant 8 : i32
      %342 = arith.muli %265, %c8_i32_117 : i32
      %c7_i32 = arith.constant 7 : i32
      %343 = arith.addi %342, %c7_i32 : i32
      %344 = arith.index_cast %343 : i32 to index
      %345 = memref.load %arg3[%344] : memref<64xi32, #tpu.memory_space<smem>>
      %346 = arith.index_cast %345 : i32 to index
      %c0_118 = arith.constant 0 : index
      %347 = vector.load %arg4[%346, %c0_118] : memref<32x10xf32, #tpu.memory_space<vmem>>, vector<1x10xf32>
      %348 = arith.index_cast %341 : i32 to index
      %c0_119 = arith.constant 0 : index
      %349 = vector.load %arg7[%348, %c0_119] : memref<72x10xf32, #tpu.memory_space<vmem>>, vector<1x10xf32>
      tpu.vector_store %arg7[%348, %c0_119], %347 {strides = array<i32>} : memref<72x10xf32, #tpu.memory_space<vmem>>, vector<1x10xf32>,
    }
    %c8_i32_1 = arith.constant 8 : i32
    %c0 = arith.constant 0 : index
    %c0_2 = arith.constant 0 : index
    %2 = vector.load %arg6[%c0, %c0_2] : memref<8x10xf32, #tpu.memory_space<vmem>>, vector<8x10xf32>
    %3 = arith.mulf %2, %2 : vector<8x10xf32>
    %cst = arith.constant dense<0.000000e+00> : vector<8xf32>
    %4 = vector.multi_reduction <add>, %3, %cst [1] : vector<8x10xf32> to vector<8xf32>
    %5 = vector.shape_cast %4 : vector<8xf32> to vector<8x1xf32>
    %cst_3 = arith.constant 1.000000e+00 : f32
    %6 = vector.broadcast %cst_3 : f32 to vector<8x1xf32>
    %7 = arith.subf %6, %5 : vector<8x1xf32>
    %cst_4 = arith.constant 1.000000e-07 : f32
    %8 = vector.broadcast %cst_4 : f32 to vector<8x1xf32>
    %9 = arith.maximumf %7, %8 : vector<8x1xf32>
    %c0_5 = arith.constant 0 : index
    %c0_6 = arith.constant 0 : index
    %10 = vector.load %arg7[%c0_5, %c0_6] : memref<72x10xf32, #tpu.memory_space<vmem>>, vector<8x10xf32>
    %11 = arith.mulf %10, %10 : vector<8x10xf32>
    %cst_7 = arith.constant dense<0.000000e+00> : vector<8xf32>
    %12 = vector.multi_reduction <add>, %11, %cst_7 [1] : vector<8x10xf32> to vector<8xf32>
    %13 = vector.shape_cast %12 : vector<8xf32> to vector<8x1xf32>
    %14 = arith.subf %2, %10 : vector<8x10xf32>
    %15 = arith.mulf %14, %14 : vector<8x10xf32>
    %cst_8 = arith.constant dense<0.000000e+00> : vector<8xf32>
    %16 = vector.multi_reduction <add>, %15, %cst_8 [1] : vector<8x10xf32> to vector<8xf32>
    %17 = vector.shape_cast %16 : vector<8xf32> to vector<8x1xf32>
    %cst_9 = arith.constant 2.000000e+00 : f32
    %18 = vector.broadcast %cst_9 : f32 to vector<8x1xf32>
    %19 = arith.mulf %18, %17 : vector<8x1xf32>
    %cst_10 = arith.constant 1.000000e+00 : f32
    %20 = vector.broadcast %cst_10 : f32 to vector<8x1xf32>
    %21 = arith.subf %20, %13 : vector<8x1xf32>
    %cst_11 = arith.constant 1.000000e-07 : f32
    %22 = vector.broadcast %cst_11 : f32 to vector<8x1xf32>
    %23 = arith.maximumf %21, %22 : vector<8x1xf32>
    %24 = arith.mulf %9, %23 : vector<8x1xf32>
    %25 = arith.divf %19, %24 : vector<8x1xf32>
    %cst_12 = arith.constant 2.000000e+00 : f32
    %26 = vector.broadcast %cst_12 : f32 to vector<8x1xf32>
    %27 = arith.addf %25, %26 : vector<8x1xf32>
    %28 = arith.mulf %25, %27 : vector<8x1xf32>
    %29 = math.sqrt %28 : vector<8x1xf32>
    %30 = arith.addf %25, %29 : vector<8x1xf32>
    %cst_13 = arith.constant 1.000000e+00 : f32
    %31 = vector.broadcast %cst_13 : f32 to vector<8x1xf32>
    %32 = arith.addf %31, %30 : vector<8x1xf32>
    %33 = math.log %32 : vector<8x1xf32>
    %cst_14 = arith.constant 0.000000e+00 : f32
    %34 = vector.broadcast %cst_14 : f32 to vector<8x1xf32>
    %35 = arith.subf %34, %33 : vector<8x1xf32>
    %36 = math.exp %35 : vector<8x1xf32>
    %c8 = arith.constant 8 : index
    %c0_15 = arith.constant 0 : index
    %37 = vector.load %arg7[%c8, %c0_15] : memref<72x10xf32, #tpu.memory_space<vmem>>, vector<8x10xf32>
    %38 = arith.mulf %37, %37 : vector<8x10xf32>
    %cst_16 = arith.constant dense<0.000000e+00> : vector<8xf32>
    %39 = vector.multi_reduction <add>, %38, %cst_16 [1] : vector<8x10xf32> to vector<8xf32>
    %40 = vector.shape_cast %39 : vector<8xf32> to vector<8x1xf32>
    %41 = arith.subf %2, %37 : vector<8x10xf32>
    %42 = arith.mulf %41, %41 : vector<8x10xf32>
    %cst_17 = arith.constant dense<0.000000e+00> : vector<8xf32>
    %43 = vector.multi_reduction <add>, %42, %cst_17 [1] : vector<8x10xf32> to vector<8xf32>
    %44 = vector.shape_cast %43 : vector<8xf32> to vector<8x1xf32>
    %cst_18 = arith.constant 2.000000e+00 : f32
    %45 = vector.broadcast %cst_18 : f32 to vector<8x1xf32>
    %46 = arith.mulf %45, %44 : vector<8x1xf32>
    %cst_19 = arith.constant 1.000000e+00 : f32
    %47 = vector.broadcast %cst_19 : f32 to vector<8x1xf32>
    %48 = arith.subf %47, %40 : vector<8x1xf32>
    %cst_20 = arith.constant 1.000000e-07 : f32
    %49 = vector.broadcast %cst_20 : f32 to vector<8x1xf32>
    %50 = arith.maximumf %48, %49 : vector<8x1xf32>
    %51 = arith.mulf %9, %50 : vector<8x1xf32>
    %52 = arith.divf %46, %51 : vector<8x1xf32>
    %cst_21 = arith.constant 2.000000e+00 : f32
    %53 = vector.broadcast %cst_21 : f32 to vector<8x1xf32>
    %54 = arith.addf %52, %53 : vector<8x1xf32>
    %55 = arith.mulf %52, %54 : vector<8x1xf32>
    %56 = math.sqrt %55 : vector<8x1xf32>
    %57 = arith.addf %52, %56 : vector<8x1xf32>
    %cst_22 = arith.constant 1.000000e+00 : f32
    %58 = vector.broadcast %cst_22 : f32 to vector<8x1xf32>
    %59 = arith.addf %58, %57 : vector<8x1xf32>
    %60 = math.log %59 : vector<8x1xf32>
    %cst_23 = arith.constant 0.000000e+00 : f32
    %61 = vector.broadcast %cst_23 : f32 to vector<8x1xf32>
    %62 = arith.subf %61, %60 : vector<8x1xf32>
    %63 = math.exp %62 : vector<8x1xf32>
    %c16 = arith.constant 16 : index
    %c0_24 = arith.constant 0 : index
    %64 = vector.load %arg7[%c16, %c0_24] : memref<72x10xf32, #tpu.memory_space<vmem>>, vector<8x10xf32>
    %65 = arith.mulf %64, %64 : vector<8x10xf32>
    %cst_25 = arith.constant dense<0.000000e+00> : vector<8xf32>
    %66 = vector.multi_reduction <add>, %65, %cst_25 [1] : vector<8x10xf32> to vector<8xf32>
    %67 = vector.shape_cast %66 : vector<8xf32> to vector<8x1xf32>
    %68 = arith.subf %2, %64 : vector<8x10xf32>
    %69 = arith.mulf %68, %68 : vector<8x10xf32>
    %cst_26 = arith.constant dense<0.000000e+00> : vector<8xf32>
    %70 = vector.multi_reduction <add>, %69, %cst_26 [1] : vector<8x10xf32> to vector<8xf32>
    %71 = vector.shape_cast %70 : vector<8xf32> to vector<8x1xf32>
    %cst_27 = arith.constant 2.000000e+00 : f32
    %72 = vector.broadcast %cst_27 : f32 to vector<8x1xf32>
    %73 = arith.mulf %72, %71 : vector<8x1xf32>
    %cst_28 = arith.constant 1.000000e+00 : f32
    %74 = vector.broadcast %cst_28 : f32 to vector<8x1xf32>
    %75 = arith.subf %74, %67 : vector<8x1xf32>
    %cst_29 = arith.constant 1.000000e-07 : f32
    %76 = vector.broadcast %cst_29 : f32 to vector<8x1xf32>
    %77 = arith.maximumf %75, %76 : vector<8x1xf32>
    %78 = arith.mulf %9, %77 : vector<8x1xf32>
    %79 = arith.divf %73, %78 : vector<8x1xf32>
    %cst_30 = arith.constant 2.000000e+00 : f32
    %80 = vector.broadcast %cst_30 : f32 to vector<8x1xf32>
    %81 = arith.addf %79, %80 : vector<8x1xf32>
    %82 = arith.mulf %79, %81 : vector<8x1xf32>
    %83 = math.sqrt %82 : vector<8x1xf32>
    %84 = arith.addf %79, %83 : vector<8x1xf32>
    %cst_31 = arith.constant 1.000000e+00 : f32
    %85 = vector.broadcast %cst_31 : f32 to vector<8x1xf32>
    %86 = arith.addf %85, %84 : vector<8x1xf32>
    %87 = math.log %86 : vector<8x1xf32>
    %cst_32 = arith.constant 0.000000e+00 : f32
    %88 = vector.broadcast %cst_32 : f32 to vector<8x1xf32>
    %89 = arith.subf %88, %87 : vector<8x1xf32>
    %90 = math.exp %89 : vector<8x1xf32>
    %91 = arith.addf %63, %90 : vector<8x1xf32>
    %c24 = arith.constant 24 : index
    %c0_33 = arith.constant 0 : index
    %92 = vector.load %arg7[%c24, %c0_33] : memref<72x10xf32, #tpu.memory_space<vmem>>, vector<8x10xf32>
    %93 = arith.mulf %92, %92 : vector<8x10xf32>
    %cst_34 = arith.constant dense<0.000000e+00> : vector<8xf32>
    %94 = vector.multi_reduction <add>, %93, %cst_34 [1] : vector<8x10xf32> to vector<8xf32>
    %95 = vector.shape_cast %94 : vector<8xf32> to vector<8x1xf32>
    %96 = arith.subf %2, %92 : vector<8x10xf32>
    %97 = arith.mulf %96, %96 : vector<8x10xf32>
    %cst_35 = arith.constant dense<0.000000e+00> : vector<8xf32>
    %98 = vector.multi_reduction <add>, %97, %cst_35 [1] : vector<8x10xf32> to vector<8xf32>
    %99 = vector.shape_cast %98 : vector<8xf32> to vector<8x1xf32>
    %cst_36 = arith.constant 2.000000e+00 : f32
    %100 = vector.broadcast %cst_36 : f32 to vector<8x1xf32>
    %101 = arith.mulf %100, %99 : vector<8x1xf32>
    %cst_37 = arith.constant 1.000000e+00 : f32
    %102 = vector.broadcast %cst_37 : f32 to vector<8x1xf32>
    %103 = arith.subf %102, %95 : vector<8x1xf32>
    %cst_38 = arith.constant 1.000000e-07 : f32
    %104 = vector.broadcast %cst_38 : f32 to vector<8x1xf32>
    %105 = arith.maximumf %103, %104 : vector<8x1xf32>
    %106 = arith.mulf %9, %105 : vector<8x1xf32>
    %107 = arith.divf %101, %106 : vector<8x1xf32>
    %cst_39 = arith.constant 2.000000e+00 : f32
    %108 = vector.broadcast %cst_39 : f32 to vector<8x1xf32>
    %109 = arith.addf %107, %108 : vector<8x1xf32>
    %110 = arith.mulf %107, %109 : vector<8x1xf32>
    %111 = math.sqrt %110 : vector<8x1xf32>
    %112 = arith.addf %107, %111 : vector<8x1xf32>
    %cst_40 = arith.constant 1.000000e+00 : f32
    %113 = vector.broadcast %cst_40 : f32 to vector<8x1xf32>
    %114 = arith.addf %113, %112 : vector<8x1xf32>
    %115 = math.log %114 : vector<8x1xf32>
    %cst_41 = arith.constant 0.000000e+00 : f32
    %116 = vector.broadcast %cst_41 : f32 to vector<8x1xf32>
    %117 = arith.subf %116, %115 : vector<8x1xf32>
    %118 = math.exp %117 : vector<8x1xf32>
    %119 = arith.addf %91, %118 : vector<8x1xf32>
    %c32 = arith.constant 32 : index
    %c0_42 = arith.constant 0 : index
    %120 = vector.load %arg7[%c32, %c0_42] : memref<72x10xf32, #tpu.memory_space<vmem>>, vector<8x10xf32>
    %121 = arith.mulf %120, %120 : vector<8x10xf32>
    %cst_43 = arith.constant dense<0.000000e+00> : vector<8xf32>
    %122 = vector.multi_reduction <add>, %121, %cst_43 [1] : vector<8x10xf32> to vector<8xf32>
    %123 = vector.shape_cast %122 : vector<8xf32> to vector<8x1xf32>
    %124 = arith.subf %2, %120 : vector<8x10xf32>
    %125 = arith.mulf %124, %124 : vector<8x10xf32>
    %cst_44 = arith.constant dense<0.000000e+00> : vector<8xf32>
    %126 = vector.multi_reduction <add>, %125, %cst_44 [1] : vector<8x10xf32> to vector<8xf32>
    %127 = vector.shape_cast %126 : vector<8xf32> to vector<8x1xf32>
    %cst_45 = arith.constant 2.000000e+00 : f32
    %128 = vector.broadcast %cst_45 : f32 to vector<8x1xf32>
    %129 = arith.mulf %128, %127 : vector<8x1xf32>
    %cst_46 = arith.constant 1.000000e+00 : f32
    %130 = vector.broadcast %cst_46 : f32 to vector<8x1xf32>
    %131 = arith.subf %130, %123 : vector<8x1xf32>
    %cst_47 = arith.constant 1.000000e-07 : f32
    %132 = vector.broadcast %cst_47 : f32 to vector<8x1xf32>
    %133 = arith.maximumf %131, %132 : vector<8x1xf32>
    %134 = arith.mulf %9, %133 : vector<8x1xf32>
    %135 = arith.divf %129, %134 : vector<8x1xf32>
    %cst_48 = arith.constant 2.000000e+00 : f32
    %136 = vector.broadcast %cst_48 : f32 to vector<8x1xf32>
    %137 = arith.addf %135, %136 : vector<8x1xf32>
    %138 = arith.mulf %135, %137 : vector<8x1xf32>
    %139 = math.sqrt %138 : vector<8x1xf32>
    %140 = arith.addf %135, %139 : vector<8x1xf32>
    %cst_49 = arith.constant 1.000000e+00 : f32
    %141 = vector.broadcast %cst_49 : f32 to vector<8x1xf32>
    %142 = arith.addf %141, %140 : vector<8x1xf32>
    %143 = math.log %142 : vector<8x1xf32>
    %cst_50 = arith.constant 0.000000e+00 : f32
    %144 = vector.broadcast %cst_50 : f32 to vector<8x1xf32>
    %145 = arith.subf %144, %143 : vector<8x1xf32>
    %146 = math.exp %145 : vector<8x1xf32>
    %147 = arith.addf %119, %146 : vector<8x1xf32>
    %c40 = arith.constant 40 : index
    %c0_51 = arith.constant 0 : index
    %148 = vector.load %arg7[%c40, %c0_51] : memref<72x10xf32, #tpu.memory_space<vmem>>, vector<8x10xf32>
    %149 = arith.mulf %148, %148 : vector<8x10xf32>
    %cst_52 = arith.constant dense<0.000000e+00> : vector<8xf32>
    %150 = vector.multi_reduction <add>, %149, %cst_52 [1] : vector<8x10xf32> to vector<8xf32>
    %151 = vector.shape_cast %150 : vector<8xf32> to vector<8x1xf32>
    %152 = arith.subf %2, %148 : vector<8x10xf32>
    %153 = arith.mulf %152, %152 : vector<8x10xf32>
    %cst_53 = arith.constant dense<0.000000e+00> : vector<8xf32>
    %154 = vector.multi_reduction <add>, %153, %cst_53 [1] : vector<8x10xf32> to vector<8xf32>
    %155 = vector.shape_cast %154 : vector<8xf32> to vector<8x1xf32>
    %cst_54 = arith.constant 2.000000e+00 : f32
    %156 = vector.broadcast %cst_54 : f32 to vector<8x1xf32>
    %157 = arith.mulf %156, %155 : vector<8x1xf32>
    %cst_55 = arith.constant 1.000000e+00 : f32
    %158 = vector.broadcast %cst_55 : f32 to vector<8x1xf32>
    %159 = arith.subf %158, %151 : vector<8x1xf32>
    %cst_56 = arith.constant 1.000000e-07 : f32
    %160 = vector.broadcast %cst_56 : f32 to vector<8x1xf32>
    %161 = arith.maximumf %159, %160 : vector<8x1xf32>
    %162 = arith.mulf %9, %161 : vector<8x1xf32>
    %163 = arith.divf %157, %162 : vector<8x1xf32>
    %cst_57 = arith.constant 2.000000e+00 : f32
    %164 = vector.broadcast %cst_57 : f32 to vector<8x1xf32>
    %165 = arith.addf %163, %164 : vector<8x1xf32>
    %166 = arith.mulf %163, %165 : vector<8x1xf32>
    %167 = math.sqrt %166 : vector<8x1xf32>
    %168 = arith.addf %163, %167 : vector<8x1xf32>
    %cst_58 = arith.constant 1.000000e+00 : f32
    %169 = vector.broadcast %cst_58 : f32 to vector<8x1xf32>
    %170 = arith.addf %169, %168 : vector<8x1xf32>
    %171 = math.log %170 : vector<8x1xf32>
    %cst_59 = arith.constant 0.000000e+00 : f32
    %172 = vector.broadcast %cst_59 : f32 to vector<8x1xf32>
    %173 = arith.subf %172, %171 : vector<8x1xf32>
    %174 = math.exp %173 : vector<8x1xf32>
    %175 = arith.addf %147, %174 : vector<8x1xf32>
    %c48 = arith.constant 48 : index
    %c0_60 = arith.constant 0 : index
    %176 = vector.load %arg7[%c48, %c0_60] : memref<72x10xf32, #tpu.memory_space<vmem>>, vector<8x10xf32>
    %177 = arith.mulf %176, %176 : vector<8x10xf32>
    %cst_61 = arith.constant dense<0.000000e+00> : vector<8xf32>
    %178 = vector.multi_reduction <add>, %177, %cst_61 [1] : vector<8x10xf32> to vector<8xf32>
    %179 = vector.shape_cast %178 : vector<8xf32> to vector<8x1xf32>
    %180 = arith.subf %2, %176 : vector<8x10xf32>
    %181 = arith.mulf %180, %180 : vector<8x10xf32>
    %cst_62 = arith.constant dense<0.000000e+00> : vector<8xf32>
    %182 = vector.multi_reduction <add>, %181, %cst_62 [1] : vector<8x10xf32> to vector<8xf32>
    %183 = vector.shape_cast %182 : vector<8xf32> to vector<8x1xf32>
    %cst_63 = arith.constant 2.000000e+00 : f32
    %184 = vector.broadcast %cst_63 : f32 to vector<8x1xf32>
    %185 = arith.mulf %184, %183 : vector<8x1xf32>
    %cst_64 = arith.constant 1.000000e+00 : f32
    %186 = vector.broadcast %cst_64 : f32 to vector<8x1xf32>
    %187 = arith.subf %186, %179 : vector<8x1xf32>
    %cst_65 = arith.constant 1.000000e-07 : f32
    %188 = vector.broadcast %cst_65 : f32 to vector<8x1xf32>
    %189 = arith.maximumf %187, %188 : vector<8x1xf32>
    %190 = arith.mulf %9, %189 : vector<8x1xf32>
    %191 = arith.divf %185, %190 : vector<8x1xf32>
    %cst_66 = arith.constant 2.000000e+00 : f32
    %192 = vector.broadcast %cst_66 : f32 to vector<8x1xf32>
    %193 = arith.addf %191, %192 : vector<8x1xf32>
    %194 = arith.mulf %191, %193 : vector<8x1xf32>
    %195 = math.sqrt %194 : vector<8x1xf32>
    %196 = arith.addf %191, %195 : vector<8x1xf32>
    %cst_67 = arith.constant 1.000000e+00 : f32
    %197 = vector.broadcast %cst_67 : f32 to vector<8x1xf32>
    %198 = arith.addf %197, %196 : vector<8x1xf32>
    %199 = math.log %198 : vector<8x1xf32>
    %cst_68 = arith.constant 0.000000e+00 : f32
    %200 = vector.broadcast %cst_68 : f32 to vector<8x1xf32>
    %201 = arith.subf %200, %199 : vector<8x1xf32>
    %202 = math.exp %201 : vector<8x1xf32>
    %203 = arith.addf %175, %202 : vector<8x1xf32>
    %c56 = arith.constant 56 : index
    %c0_69 = arith.constant 0 : index
    %204 = vector.load %arg7[%c56, %c0_69] : memref<72x10xf32, #tpu.memory_space<vmem>>, vector<8x10xf32>
    %205 = arith.mulf %204, %204 : vector<8x10xf32>
    %cst_70 = arith.constant dense<0.000000e+00> : vector<8xf32>
    %206 = vector.multi_reduction <add>, %205, %cst_70 [1] : vector<8x10xf32> to vector<8xf32>
    %207 = vector.shape_cast %206 : vector<8xf32> to vector<8x1xf32>
    %208 = arith.subf %2, %204 : vector<8x10xf32>
    %209 = arith.mulf %208, %208 : vector<8x10xf32>
    %cst_71 = arith.constant dense<0.000000e+00> : vector<8xf32>
    %210 = vector.multi_reduction <add>, %209, %cst_71 [1] : vector<8x10xf32> to vector<8xf32>
    %211 = vector.shape_cast %210 : vector<8xf32> to vector<8x1xf32>
    %cst_72 = arith.constant 2.000000e+00 : f32
    %212 = vector.broadcast %cst_72 : f32 to vector<8x1xf32>
    %213 = arith.mulf %212, %211 : vector<8x1xf32>
    %cst_73 = arith.constant 1.000000e+00 : f32
    %214 = vector.broadcast %cst_73 : f32 to vector<8x1xf32>
    %215 = arith.subf %214, %207 : vector<8x1xf32>
    %cst_74 = arith.constant 1.000000e-07 : f32
    %216 = vector.broadcast %cst_74 : f32 to vector<8x1xf32>
    %217 = arith.maximumf %215, %216 : vector<8x1xf32>
    %218 = arith.mulf %9, %217 : vector<8x1xf32>
    %219 = arith.divf %213, %218 : vector<8x1xf32>
    %cst_75 = arith.constant 2.000000e+00 : f32
    %220 = vector.broadcast %cst_75 : f32 to vector<8x1xf32>
    %221 = arith.addf %219, %220 : vector<8x1xf32>
    %222 = arith.mulf %219, %221 : vector<8x1xf32>
    %223 = math.sqrt %222 : vector<8x1xf32>
    %224 = arith.addf %219, %223 : vector<8x1xf32>
    %cst_76 = arith.constant 1.000000e+00 : f32
    %225 = vector.broadcast %cst_76 : f32 to vector<8x1xf32>
    %226 = arith.addf %225, %224 : vector<8x1xf32>
    %227 = math.log %226 : vector<8x1xf32>
    %cst_77 = arith.constant 0.000000e+00 : f32
    %228 = vector.broadcast %cst_77 : f32 to vector<8x1xf32>
    %229 = arith.subf %228, %227 : vector<8x1xf32>
    %230 = math.exp %229 : vector<8x1xf32>
    %231 = arith.addf %203, %230 : vector<8x1xf32>
    %c64 = arith.constant 64 : index
    %c0_78 = arith.constant 0 : index
    %232 = vector.load %arg7[%c64, %c0_78] : memref<72x10xf32, #tpu.memory_space<vmem>>, vector<8x10xf32>
    %233 = arith.mulf %232, %232 : vector<8x10xf32>
    %cst_79 = arith.constant dense<0.000000e+00> : vector<8xf32>
    %234 = vector.multi_reduction <add>, %233, %cst_79 [1] : vector<8x10xf32> to vector<8xf32>
    %235 = vector.shape_cast %234 : vector<8xf32> to vector<8x1xf32>
    %236 = arith.subf %2, %232 : vector<8x10xf32>
    %237 = arith.mulf %236, %236 : vector<8x10xf32>
    %cst_80 = arith.constant dense<0.000000e+00> : vector<8xf32>
    %238 = vector.multi_reduction <add>, %237, %cst_80 [1] : vector<8x10xf32> to vector<8xf32>
    %239 = vector.shape_cast %238 : vector<8xf32> to vector<8x1xf32>
    %cst_81 = arith.constant 2.000000e+00 : f32
    %240 = vector.broadcast %cst_81 : f32 to vector<8x1xf32>
    %241 = arith.mulf %240, %239 : vector<8x1xf32>
    %cst_82 = arith.constant 1.000000e+00 : f32
    %242 = vector.broadcast %cst_82 : f32 to vector<8x1xf32>
    %243 = arith.subf %242, %235 : vector<8x1xf32>
    %cst_83 = arith.constant 1.000000e-07 : f32
    %244 = vector.broadcast %cst_83 : f32 to vector<8x1xf32>
    %245 = arith.maximumf %243, %244 : vector<8x1xf32>
    %246 = arith.mulf %9, %245 : vector<8x1xf32>
    %247 = arith.divf %241, %246 : vector<8x1xf32>
    %cst_84 = arith.constant 2.000000e+00 : f32
    %248 = vector.broadcast %cst_84 : f32 to vector<8x1xf32>
    %249 = arith.addf %247, %248 : vector<8x1xf32>
    %250 = arith.mulf %247, %249 : vector<8x1xf32>
    %251 = math.sqrt %250 : vector<8x1xf32>
    %252 = arith.addf %247, %251 : vector<8x1xf32>
    %cst_85 = arith.constant 1.000000e+00 : f32
    %253 = vector.broadcast %cst_85 : f32 to vector<8x1xf32>
    %254 = arith.addf %253, %252 : vector<8x1xf32>
    %255 = math.log %254 : vector<8x1xf32>
    %cst_86 = arith.constant 0.000000e+00 : f32
    %256 = vector.broadcast %cst_86 : f32 to vector<8x1xf32>
    %257 = arith.subf %256, %255 : vector<8x1xf32>
    %258 = math.exp %257 : vector<8x1xf32>
    %259 = arith.addf %231, %258 : vector<8x1xf32>
    %260 = tpu.reciprocal %259 {approx = true} : vector<8x1xf32> -> vector<8x1xf32>
    %261 = arith.mulf %36, %260 : vector<8x1xf32>
    %262 = vector.shape_cast %261 : vector<8x1xf32> to vector<8x1xf32>
    %263 = vector.broadcast %262 : vector<8x1xf32> to vector<8x128xf32>
    %c0_87 = arith.constant 0 : index
    %c0_88 = arith.constant 0 : index
    %264 = vector.load %arg5[%c0_87, %c0_88] : memref<8x128xf32, #tpu.memory_space<vmem>>, vector<8x128xf32>
    tpu.vector_store %arg5[%c0_87, %c0_88], %263 {strides = array<i32>} : memref<8x128xf32, #tpu.memory_space<vmem>>, vector<8x128xf32>,
    return
  }
  func.func @transform_0(%arg0: i32, %arg1: memref<8xi32, #tpu.memory_space<smem>>, %arg2: memref<8xi32, #tpu.memory_space<smem>>, %arg3: memref<64xi32, #tpu.memory_space<smem>>) -> (i32, i32) {
    %c0_i32 = arith.constant 0 : i32
    %c0_i32_0 = arith.constant 0 : i32
    %c0_i32_1 = arith.constant 0 : i32
    return %c0_i32, %c0_i32_0 : i32, i32
  }
  func.func @transform_1(%arg0: i32, %arg1: memref<8xi32, #tpu.memory_space<smem>>, %arg2: memref<8xi32, #tpu.memory_space<smem>>, %arg3: memref<64xi32, #tpu.memory_space<smem>>) -> (i32, i32) {
    %c0_i32 = arith.constant 0 : i32
    %c0_i32_0 = arith.constant 0 : i32
    return %arg0, %c0_i32 : i32, i32
  }
}

</mosaic_0001>

<llo_original>
// kernel: tpu_custom_call.1
$region0: #{tpu_custom_call.1}
  #allocation0 [shape = 'u32[]', space=smem, size = 0x4, offset = 0x4, fixed_abs, tag = 'smem constant byte address 0x4 - core index']
  #allocation1 [shape = 'u32[72,128]{1,0:T(1,128)}', space=vmem, size = 0x9000, scoped, tag = 'internal scratch']
  #allocation2 [shape = 'f32[8,10]{1,0:T(8,128)}', space=vmem, size = 0x1000, scoped, tag = 'scratch operand']
  #allocation3 [shape = 'f32[72,10]{1,0:T(8,128)}', space=vmem, size = 0x9000, scoped, tag = 'scratch operand']
  #allocation4 [shape = 's32[1]{0}', space=sflag, size = 0x4, scoped, tag = 'scoped memory for tpu_custom_call.1']
  #allocation5 [shape = 'u8[512]{0}', space=smem, size = 0x200, scoped, tag = 'prefetched SMEM operand 0']
  #allocation6 [shape = 'u8[512]{0}', space=smem, size = 0x200, scoped, tag = 'prefetched SMEM operand 1']
  #allocation7 [shape = 'u8[512]{0}', space=smem, size = 0x200, scoped, tag = 'prefetched SMEM operand 2']
  %s0 = inlined_call_operand.vmem [shape: s32[8], index: 0, kind: input, shape index: {}]
  %s1 = inlined_call_operand.vmem [shape: s32[8], index: 1, kind: input, shape index: {}]
  %s2 = inlined_call_operand.vmem [shape: s32[64], index: 2, kind: input, shape index: {}]
  %s3 = inlined_call_operand.vmem [shape: f32[32,10], index: 3, kind: input, shape index: {}]
  %s4 = inlined_call_operand.hbm [shape: f32[8,128], index: 4, kind: output, shape index: {}]
  %s5 = sld [smem:[#allocation0]]
  $region21: #{tpu_custom_call.1} parent=0
    _
  %s7 = ssub.s32 1, %s5
  %s8 = scalar_select 0, %s7, %s5
  %s10 = sshll.u32 %s0, 4
  %s11 = int_to_ptr.vmem [resolvable:$true] %s10
  %13 = dma.vmem_to_smem %s11, 16, [#allocation5], [#allocation4]
  %s15 = sshll.u32 %s1, 4
  %s16 = int_to_ptr.vmem [resolvable:$true] %s15
  %18 = dma.vmem_to_smem %s16, 16, [#allocation6], [#allocation4]
  %s20 = sshll.u32 %s2, 4
  %s21 = int_to_ptr.vmem [resolvable:$true] %s20
  %23 = dma.vmem_to_smem %s21, 16, [#allocation7], [#allocation4]
  %25 = dma.done [#allocation4], 48
  %26 = sfence
  $region1: #{tpu_custom_call.1} parent=0
    #allocation8 [shape = 'u8[4096]{0}', space=vmem, size = 0x1000, scoped, tag = 'output window, operand 0, single buffered']
    #allocation9 [shape = 's32[1]{0}', space=sflag, size = 0x4, scoped, tag = 'scoped memory for tpu_custom_call.1']
    %27 = vsyncpa [#allocation9], 0
    // Predicated region
    $region2: #{tpu_custom_call.1} parent=1 // pred_check
      _
    $region3: #{tpu_custom_call.1} parent=1 // pred_check_branch
      %29 = sbr.rel (0) target = $region5
    $region4: #{tpu_custom_call.1} parent=1 // pred_region
      _
    $region5: #{tpu_custom_call.1} parent=1 // pred_fallthru
      _
    %s30 = smul.u32 0, 8
    loop: start=0, step=1, limit=8
    $region6: #{tpu_custom_call.1} parent=1 // loop_pre_header
      _
    $region7: #{tpu_custom_call.1} parent=1 // loop_header
      %s32 = sphi 0, %s36
      %p33 = scmp.ge.s32.totalorder %s32, 8
    $region8: #{tpu_custom_call.1} parent=1 // loop_header_branch
      %35 = sbr.rel (%p33) target = $region12
    $region9: #{tpu_custom_call.1} parent=1 // loop_body
      %s37 = sadd.s32 %s30, %s32
      %s38 = sld [smem:[#allocation5 + %s37]]
      %s39 = scalar_lea.vmem %s3, %s38
      %v40 = vld [vmem:[%s39] sm:$0x1]
      %s41 = scalar_lea.vmem [#allocation2], %s32
      %vm42 = vcmask 73728
      %43 = vst.msk [vmem:[%s41] sm:$0x1] %vm42, %v40
      %s44 = sld [smem:[#allocation6 + %s37]]
      %s45 = scalar_lea.vmem %s3, %s44
      %v46 = vld [vmem:[%s45] sm:$0x1]
      %s47 = scalar_lea.vmem [#allocation3], %s32
      %48 = vst.msk [vmem:[%s47] sm:$0x1] %vm42, %v46
      %s49 = sadd.s32 %s32, 8
      %s50 = smul.u32 %s37, 8
      %s51 = sld [smem:[#allocation7 + %s50]]
      %s52 = scalar_lea.vmem %s3, %s51
      %v53 = vld [vmem:[%s52] sm:$0x1]
      %s54 = scalar_lea.vmem [#allocation3], %s49
      %55 = vst.msk [vmem:[%s54] sm:$0x1] %vm42, %v53
      %s56 = sadd.s32 %s32, 16
      %s57 = sadd.s32 %s50, 1
      %s58 = sld [smem:[#allocation7 + %s57]]
      %s59 = scalar_lea.vmem %s3, %s58
      %v60 = vld [vmem:[%s59] sm:$0x1]
      %s61 = scalar_lea.vmem [#allocation3], %s56
      %62 = vst.msk [vmem:[%s61] sm:$0x1] %vm42, %v60
      %s63 = sadd.s32 %s32, 24
      %s64 = sadd.s32 %s50, 2
      %s65 = sld [smem:[#allocation7 + %s64]]
      %s66 = scalar_lea.vmem %s3, %s65
      %v67 = vld [vmem:[%s66] sm:$0x1]
      %s68 = scalar_lea.vmem [#allocation3], %s63
      %69 = vst.msk [vmem:[%s68] sm:$0x1] %vm42, %v67
      %s70 = sadd.s32 %s32, 32
      %s71 = sadd.s32 %s50, 3
      %s72 = sld [smem:[#allocation7 + %s71]]
      %s73 = scalar_lea.vmem %s3, %s72
      %v74 = vld [vmem:[%s73] sm:$0x1]
      %s75 = scalar_lea.vmem [#allocation3], %s70
      %76 = vst.msk [vmem:[%s75] sm:$0x1] %vm42, %v74
      %s77 = sadd.s32 %s32, 40
      %s78 = sadd.s32 %s50, 4
      %s79 = sld [smem:[#allocation7 + %s78]]
      %s80 = scalar_lea.vmem %s3, %s79
      %v81 = vld [vmem:[%s80] sm:$0x1]
      %s82 = scalar_lea.vmem [#allocation3], %s77
      %83 = vst.msk [vmem:[%s82] sm:$0x1] %vm42, %v81
      %s84 = sadd.s32 %s32, 48
      %s85 = sadd.s32 %s50, 5
      %s86 = sld [smem:[#allocation7 + %s85]]
      %s87 = scalar_lea.vmem %s3, %s86
      %v88 = vld [vmem:[%s87] sm:$0x1]
      %s89 = scalar_lea.vmem [#allocation3], %s84
      %90 = vst.msk [vmem:[%s89] sm:$0x1] %vm42, %v88
      %s91 = sadd.s32 %s32, 56
      %s92 = sadd.s32 %s50, 6
      %s93 = sld [smem:[#allocation7 + %s92]]
      %s94 = scalar_lea.vmem %s3, %s93
      %v95 = vld [vmem:[%s94] sm:$0x1]
      %s96 = scalar_lea.vmem [#allocation3], %s91
      %97 = vst.msk [vmem:[%s96] sm:$0x1] %vm42, %v95
      %s98 = sadd.s32 %s32, 64
      %s99 = sadd.s32 %s50, 7
      %s100 = sld [smem:[#allocation7 + %s99]]
      %s101 = scalar_lea.vmem %s3, %s100
      %v102 = vld [vmem:[%s101] sm:$0x1]
      %s103 = scalar_lea.vmem [#allocation3], %s98
      %104 = vst.msk [vmem:[%s103] sm:$0x1] %vm42, %v102
    $region10: #{tpu_custom_call.1} parent=1 // loop_footer
      %s36 = sadd.s32 1, %s32
    $region11: #{tpu_custom_call.1} parent=1 // loop_footer_branch
      %31 = sbr.rel target = $region7
    $region12: #{tpu_custom_call.1} parent=1 // loop_exit
      _
    %v105 = vld [vmem:[#allocation2] sm:$0xff]
    %v106 = vmul.f32 %v105, %v105
    %vm107 = vcmask 80896
    %v108 = vsel %vm107, %v106, 0.0
    %109 = vadd.xlane.f32.xlu0 %v108
    %v110 = vpop.xlane.xlu0 %109
    %v111 = vsub.f32 1.0, %v110
    %v112 = vmax.f32 %v111, 1e-07
    %v113 = vld [vmem:[#allocation3] sm:$0xff]
    %v114 = vmul.f32 %v113, %v113
    %v115 = vsel %vm107, %v114, 0.0
    %116 = vadd.xlane.f32.xlu0 %v115
    %v117 = vpop.xlane.xlu0 %116
    %v118 = vsub.f32 %v105, %v113
    %v119 = vmul.f32 %v118, %v118
    %v120 = vsel %vm107, %v119, 0.0
    %121 = vadd.xlane.f32.xlu0 %v120
    %v122 = vpop.xlane.xlu0 %121
    %v123 = vmul.f32 %v122, 2.0
    %v124 = vsub.f32 1.0, %v117
    %v125 = vmax.f32 %v124, 1e-07
    %v126 = vmul.f32 %v112, %v125
    %v127 = vrcp.pop %v126
    %v128 = vmul.f32 %v126, %v127
    %v129 = vsub.f32 1.0, %v128
    %v130 = vmul.f32 %v127, %v129
    %v131 = vadd.f32 %v127, %v130
    %vm132 = vweird.f32 %v126
    %vm133 = vweird.f32 %v127
    %vm134 = vmor %vm132, %vm133
    %v135 = vsel %vm134, %v127, %v131
    %v136 = vand.u32 2147483647, %v126
    %vm137 = vcmp.eq.f32.partialorder %v136, 8.507059e+37
    %v138 = vand.u32 %v126, 2147483648
    %v139 = vor.u32 1.1754944e-38, %v138
    %v140 = vsel %vm137, %v139, %v135
    %v141 = vmul.f32 %v123, %v140
    %v142 = vadd.f32 %v141, 2.0
    %v143 = vmul.f32 %v141, %v142
    %v144 = vrsqrt.pop %v143
    %v145 = vmul.f32 %v144, %v143
    %v146 = vmul.f32 %v145, %v144
    %v147 = vmul.f32 0.5, %v146
    %v148 = vsub.f32 1.5, %v147
    %v149 = vmul.f32 %v144, %v148
    %v150 = vmul.f32 %v143, %v149
    %vm151 = vcmp.eq.f32.partialorder %v143, inf
    %v152 = vsel %vm151, %v143, %v150
    %vm153 = vcmp.eq.f32.partialorder %v143, 0.0
    %v154 = vand.u32 %v143, 2147483648
    %v155 = vsel %vm153, %v154, %v152
    %v156 = vadd.f32 %v141, %v155
    %v157 = vadd.f32 %v156, 1.0
    %v158 = vlog2.pop %v157
    %v159 = vmul.f32 %v158, 0.6931472
    %v160 = vsub.f32 0.0, %v159
    %v161 = vmul.f32 %v160, 1.442695
    %v162 = vpow.pop %v161
    %v163 = vld [vmem:[#allocation3 + $0x8] sm:$0xff]
    %v164 = vmul.f32 %v163, %v163
    %v165 = vsel %vm107, %v164, 0.0
    %166 = vadd.xlane.f32.xlu0 %v165
    %v167 = vpop.xlane.xlu0 %166
    %v168 = vsub.f32 %v105, %v163
    %v169 = vmul.f32 %v168, %v168
    %v170 = vsel %vm107, %v169, 0.0
    %171 = vadd.xlane.f32.xlu0 %v170
    %v172 = vpop.xlane.xlu0 %171
    %v173 = vmul.f32 %v172, 2.0
    %v174 = vsub.f32 1.0, %v167
    %v175 = vmax.f32 %v174, 1e-07
    %v176 = vmul.f32 %v112, %v175
    %v177 = vrcp.pop %v176
    %v178 = vmul.f32 %v176, %v177
    %v179 = vsub.f32 1.0, %v178
    %v180 = vmul.f32 %v177, %v179
    %v181 = vadd.f32 %v177, %v180
    %vm182 = vweird.f32 %v176
    %vm183 = vweird.f32 %v177
    %vm184 = vmor %vm182, %vm183
    %v185 = vsel %vm184, %v177, %v181
    %v186 = vand.u32 2147483647, %v176
    %vm187 = vcmp.eq.f32.partialorder %v186, 8.507059e+37
    %v188 = vand.u32 %v176, 2147483648
    %v189 = vor.u32 1.1754944e-38, %v188
    %v190 = vsel %vm187, %v189, %v185
    %v191 = vmul.f32 %v173, %v190
    %v192 = vadd.f32 %v191, 2.0
    %v193 = vmul.f32 %v191, %v192
    %v194 = vrsqrt.pop %v193
    %v195 = vmul.f32 %v194, %v193
    %v196 = vmul.f32 %v195, %v194
    %v197 = vmul.f32 0.5, %v196
    %v198 = vsub.f32 1.5, %v197
    %v199 = vmul.f32 %v194, %v198
    %v200 = vmul.f32 %v193, %v199
    %vm201 = vcmp.eq.f32.partialorder %v193, inf
    %v202 = vsel %vm201, %v193, %v200
    %vm203 = vcmp.eq.f32.partialorder %v193, 0.0
    %v204 = vand.u32 %v193, 2147483648
    %v205 = vsel %vm203, %v204, %v202
    %v206 = vadd.f32 %v191, %v205
    %v207 = vadd.f32 %v206, 1.0
    %v208 = vlog2.pop %v207
    %v209 = vmul.f32 %v208, 0.6931472
    %v210 = vsub.f32 0.0, %v209
    %v211 = vmul.f32 %v210, 1.442695
    %v212 = vpow.pop %v211
    %v213 = vld [vmem:[#allocation3 + $0x10] sm:$0xff]
    %v214 = vmul.f32 %v213, %v213
    %v215 = vsel %vm107, %v214, 0.0
    %216 = vadd.xlane.f32.xlu0 %v215
    %v217 = vpop.xlane.xlu0 %216
    %v218 = vsub.f32 %v105, %v213
    %v219 = vmul.f32 %v218, %v218
    %v220 = vsel %vm107, %v219, 0.0
    %221 = vadd.xlane.f32.xlu0 %v220
    %v222 = vpop.xlane.xlu0 %221
    %v223 = vmul.f32 %v222, 2.0
    %v224 = vsub.f32 1.0, %v217
    %v225 = vmax.f32 %v224, 1e-07
    %v226 = vmul.f32 %v112, %v225
    %v227 = vrcp.pop %v226
    %v228 = vmul.f32 %v226, %v227
    %v229 = vsub.f32 1.0, %v228
    %v230 = vmul.f32 %v227, %v229
    %v231 = vadd.f32 %v227, %v230
    %vm232 = vweird.f32 %v226
    %vm233 = vweird.f32 %v227
    %vm234 = vmor %vm232, %vm233
    %v235 = vsel %vm234, %v227, %v231
    %v236 = vand.u32 2147483647, %v226
    %vm237 = vcmp.eq.f32.partialorder %v236, 8.507059e+37
    %v238 = vand.u32 %v226, 2147483648
    %v239 = vor.u32 1.1754944e-38, %v238
    %v240 = vsel %vm237, %v239, %v235
    %v241 = vmul.f32 %v223, %v240
    %v242 = vadd.f32 %v241, 2.0
    %v243 = vmul.f32 %v241, %v242
    %v244 = vrsqrt.pop %v243
    %v245 = vmul.f32 %v244, %v243
    %v246 = vmul.f32 %v245, %v244
    %v247 = vmul.f32 0.5, %v246
    %v248 = vsub.f32 1.5, %v247
    %v249 = vmul.f32 %v244, %v248
    %v250 = vmul.f32 %v243, %v249
    %vm251 = vcmp.eq.f32.partialorder %v243, inf
    %v252 = vsel %vm251, %v243, %v250
    %vm253 = vcmp.eq.f32.partialorder %v243, 0.0
    %v254 = vand.u32 %v243, 2147483648
    %v255 = vsel %vm253, %v254, %v252
    %v256 = vadd.f32 %v241, %v255
    %v257 = vadd.f32 %v256, 1.0
    %v258 = vlog2.pop %v257
    %v259 = vmul.f32 %v258, 0.6931472
    %v260 = vsub.f32 0.0, %v259
    %v261 = vmul.f32 %v260, 1.442695
    %v262 = vpow.pop %v261
    %v263 = vadd.f32 %v212, %v262
    %v264 = vld [vmem:[#allocation3 + $0x18] sm:$0xff]
    %v265 = vmul.f32 %v264, %v264
    %v266 = vsel %vm107, %v265, 0.0
    %267 = vadd.xlane.f32.xlu0 %v266
    %v268 = vpop.xlane.xlu0 %267
    %v269 = vsub.f32 %v105, %v264
    %v270 = vmul.f32 %v269, %v269
    %v271 = vsel %vm107, %v270, 0.0
    %272 = vadd.xlane.f32.xlu0 %v271
    %v273 = vpop.xlane.xlu0 %272
    %v274 = vmul.f32 %v273, 2.0
    %v275 = vsub.f32 1.0, %v268
    %v276 = vmax.f32 %v275, 1e-07
    %v277 = vmul.f32 %v112, %v276
    %v278 = vrcp.pop %v277
    %v279 = vmul.f32 %v277, %v278
    %v280 = vsub.f32 1.0, %v279
    %v281 = vmul.f32 %v278, %v280
    %v282 = vadd.f32 %v278, %v281
    %vm283 = vweird.f32 %v277
    %vm284 = vweird.f32 %v278
    %vm285 = vmor %vm283, %vm284
    %v286 = vsel %vm285, %v278, %v282
    %v287 = vand.u32 2147483647, %v277
    %vm288 = vcmp.eq.f32.partialorder %v287, 8.507059e+37
    %v289 = vand.u32 %v277, 2147483648
    %v290 = vor.u32 1.1754944e-38, %v289
    %v291 = vsel %vm288, %v290, %v286
    %v292 = vmul.f32 %v274, %v291
    %v293 = vadd.f32 %v292, 2.0
    %v294 = vmul.f32 %v292, %v293
    %v295 = vrsqrt.pop %v294
    %v296 = vmul.f32 %v295, %v294
    %v297 = vmul.f32 %v296, %v295
    %v298 = vmul.f32 0.5, %v297
    %v299 = vsub.f32 1.5, %v298
    %v300 = vmul.f32 %v295, %v299
    %v301 = vmul.f32 %v294, %v300
    %vm302 = vcmp.eq.f32.partialorder %v294, inf
    %v303 = vsel %vm302, %v294, %v301
    %vm304 = vcmp.eq.f32.partialorder %v294, 0.0
    %v305 = vand.u32 %v294, 2147483648
    %v306 = vsel %vm304, %v305, %v303
    %v307 = vadd.f32 %v292, %v306
    %v308 = vadd.f32 %v307, 1.0
    %v309 = vlog2.pop %v308
    %v310 = vmul.f32 %v309, 0.6931472
    %v311 = vsub.f32 0.0, %v310
    %v312 = vmul.f32 %v311, 1.442695
    %v313 = vpow.pop %v312
    %v314 = vadd.f32 %v263, %v313
    %v315 = vld [vmem:[#allocation3 + $0x20] sm:$0xff]
    %v316 = vmul.f32 %v315, %v315
    %v317 = vsel %vm107, %v316, 0.0
    %318 = vadd.xlane.f32.xlu0 %v317
    %v319 = vpop.xlane.xlu0 %318
    %v320 = vsub.f32 %v105, %v315
    %v321 = vmul.f32 %v320, %v320
    %v322 = vsel %vm107, %v321, 0.0
    %323 = vadd.xlane.f32.xlu0 %v322
    %v324 = vpop.xlane.xlu0 %323
    %v325 = vmul.f32 %v324, 2.0
    %v326 = vsub.f32 1.0, %v319
    %v327 = vmax.f32 %v326, 1e-07
    %v328 = vmul.f32 %v112, %v327
    %v329 = vrcp.pop %v328
    %v330 = vmul.f32 %v328, %v329
    %v331 = vsub.f32 1.0, %v330
    %v332 = vmul.f32 %v329, %v331
    %v333 = vadd.f32 %v329, %v332
    %vm334 = vweird.f32 %v328
    %vm335 = vweird.f32 %v329
    %vm336 = vmor %vm334, %vm335
    %v337 = vsel %vm336, %v329, %v333
    %v338 = vand.u32 2147483647, %v328
    %vm339 = vcmp.eq.f32.partialorder %v338, 8.507059e+37
    %v340 = vand.u32 %v328, 2147483648
    %v341 = vor.u32 1.1754944e-38, %v340
    %v342 = vsel %vm339, %v341, %v337
    %v343 = vmul.f32 %v325, %v342
    %v344 = vadd.f32 %v343, 2.0
    %v345 = vmul.f32 %v343, %v344
    %v346 = vrsqrt.pop %v345
    %v347 = vmul.f32 %v346, %v345
    %v348 = vmul.f32 %v347, %v346
    %v349 = vmul.f32 0.5, %v348
    %v350 = vsub.f32 1.5, %v349
    %v351 = vmul.f32 %v346, %v350
    %v352 = vmul.f32 %v345, %v351
    %vm353 = vcmp.eq.f32.partialorder %v345, inf
    %v354 = vsel %vm353, %v345, %v352
    %vm355 = vcmp.eq.f32.partialorder %v345, 0.0
    %v356 = vand.u32 %v345, 2147483648
    %v357 = vsel %vm355, %v356, %v354
    %v358 = vadd.f32 %v343, %v357
    %v359 = vadd.f32 %v358, 1.0
    %v360 = vlog2.pop %v359
    %v361 = vmul.f32 %v360, 0.6931472
    %v362 = vsub.f32 0.0, %v361
    %v363 = vmul.f32 %v362, 1.442695
    %v364 = vpow.pop %v363
    %v365 = vadd.f32 %v314, %v364
    %v366 = vld [vmem:[#allocation3 + $0x28] sm:$0xff]
    %v367 = vmul.f32 %v366, %v366
    %v368 = vsel %vm107, %v367, 0.0
    %369 = vadd.xlane.f32.xlu0 %v368
    %v370 = vpop.xlane.xlu0 %369
    %v371 = vsub.f32 %v105, %v366
    %v372 = vmul.f32 %v371, %v371
    %v373 = vsel %vm107, %v372, 0.0
    %374 = vadd.xlane.f32.xlu0 %v373
    %v375 = vpop.xlane.xlu0 %374
    %v376 = vmul.f32 %v375, 2.0
    %v377 = vsub.f32 1.0, %v370
    %v378 = vmax.f32 %v377, 1e-07
    %v379 = vmul.f32 %v112, %v378
    %v380 = vrcp.pop %v379
    %v381 = vmul.f32 %v379, %v380
    %v382 = vsub.f32 1.0, %v381
    %v383 = vmul.f32 %v380, %v382
    %v384 = vadd.f32 %v380, %v383
    %vm385 = vweird.f32 %v379
    %vm386 = vweird.f32 %v380
    %vm387 = vmor %vm385, %vm386
    %v388 = vsel %vm387, %v380, %v384
    %v389 = vand.u32 2147483647, %v379
    %vm390 = vcmp.eq.f32.partialorder %v389, 8.507059e+37
    %v391 = vand.u32 %v379, 2147483648
    %v392 = vor.u32 1.1754944e-38, %v391
    %v393 = vsel %vm390, %v392, %v388
    %v394 = vmul.f32 %v376, %v393
    %v395 = vadd.f32 %v394, 2.0
    %v396 = vmul.f32 %v394, %v395
    %v397 = vrsqrt.pop %v396
    %v398 = vmul.f32 %v397, %v396
    %v399 = vmul.f32 %v398, %v397
    %v400 = vmul.f32 0.5, %v399
    %v401 = vsub.f32 1.5, %v400
    %v402 = vmul.f32 %v397, %v401
    %v403 = vmul.f32 %v396, %v402
    %vm404 = vcmp.eq.f32.partialorder %v396, inf
    %v405 = vsel %vm404, %v396, %v403
    %vm406 = vcmp.eq.f32.partialorder %v396, 0.0
    %v407 = vand.u32 %v396, 2147483648
    %v408 = vsel %vm406, %v407, %v405
    %v409 = vadd.f32 %v394, %v408
    %v410 = vadd.f32 %v409, 1.0
    %v411 = vlog2.pop %v410
    %v412 = vmul.f32 %v411, 0.6931472
    %v413 = vsub.f32 0.0, %v412
    %v414 = vmul.f32 %v413, 1.442695
    %v415 = vpow.pop %v414
    %v416 = vadd.f32 %v365, %v415
    %v417 = vld [vmem:[#allocation3 + $0x30] sm:$0xff]
    %v418 = vmul.f32 %v417, %v417
    %v419 = vsel %vm107, %v418, 0.0
    %420 = vadd.xlane.f32.xlu0 %v419
    %v421 = vpop.xlane.xlu0 %420
    %v422 = vsub.f32 %v105, %v417
    %v423 = vmul.f32 %v422, %v422
    %v424 = vsel %vm107, %v423, 0.0
    %425 = vadd.xlane.f32.xlu0 %v424
    %v426 = vpop.xlane.xlu0 %425
    %v427 = vmul.f32 %v426, 2.0
    %v428 = vsub.f32 1.0, %v421
    %v429 = vmax.f32 %v428, 1e-07
    %v430 = vmul.f32 %v112, %v429
    %v431 = vrcp.pop %v430
    %v432 = vmul.f32 %v430, %v431
    %v433 = vsub.f32 1.0, %v432
    %v434 = vmul.f32 %v431, %v433
    %v435 = vadd.f32 %v431, %v434
    %vm436 = vweird.f32 %v430
    %vm437 = vweird.f32 %v431
    %vm438 = vmor %vm436, %vm437
    %v439 = vsel %vm438, %v431, %v435
    %v440 = vand.u32 2147483647, %v430
    %vm441 = vcmp.eq.f32.partialorder %v440, 8.507059e+37
    %v442 = vand.u32 %v430, 2147483648
    %v443 = vor.u32 1.1754944e-38, %v442
    %v444 = vsel %vm441, %v443, %v439
    %v445 = vmul.f32 %v427, %v444
    %v446 = vadd.f32 %v445, 2.0
    %v447 = vmul.f32 %v445, %v446
    %v448 = vrsqrt.pop %v447
    %v449 = vmul.f32 %v448, %v447
    %v450 = vmul.f32 %v449, %v448
    %v451 = vmul.f32 0.5, %v450
    %v452 = vsub.f32 1.5, %v451
    %v453 = vmul.f32 %v448, %v452
    %v454 = vmul.f32 %v447, %v453
    %vm455 = vcmp.eq.f32.partialorder %v447, inf
    %v456 = vsel %vm455, %v447, %v454
    %vm457 = vcmp.eq.f32.partialorder %v447, 0.0
    %v458 = vand.u32 %v447, 2147483648
    %v459 = vsel %vm457, %v458, %v456
    %v460 = vadd.f32 %v445, %v459
    %v461 = vadd.f32 %v460, 1.0
    %v462 = vlog2.pop %v461
    %v463 = vmul.f32 %v462, 0.6931472
    %v464 = vsub.f32 0.0, %v463
    %v465 = vmul.f32 %v464, 1.442695
    %v466 = vpow.pop %v465
    %v467 = vadd.f32 %v416, %v466
    %v468 = vld [vmem:[#allocation3 + $0x38] sm:$0xff]
    %v469 = vmul.f32 %v468, %v468
    %v470 = vsel %vm107, %v469, 0.0
    %471 = vadd.xlane.f32.xlu0 %v470
    %v472 = vpop.xlane.xlu0 %471
    %v473 = vsub.f32 %v105, %v468
    %v474 = vmul.f32 %v473, %v473
    %v475 = vsel %vm107, %v474, 0.0
    %476 = vadd.xlane.f32.xlu0 %v475
    %v477 = vpop.xlane.xlu0 %476
    %v478 = vmul.f32 %v477, 2.0
    %v479 = vsub.f32 1.0, %v472
    %v480 = vmax.f32 %v479, 1e-07
    %v481 = vmul.f32 %v112, %v480
    %v482 = vrcp.pop %v481
    %v483 = vmul.f32 %v481, %v482
    %v484 = vsub.f32 1.0, %v483
    %v485 = vmul.f32 %v482, %v484
    %v486 = vadd.f32 %v482, %v485
    %vm487 = vweird.f32 %v481
    %vm488 = vweird.f32 %v482
    %vm489 = vmor %vm487, %vm488
    %v490 = vsel %vm489, %v482, %v486
    %v491 = vand.u32 2147483647, %v481
    %vm492 = vcmp.eq.f32.partialorder %v491, 8.507059e+37
    %v493 = vand.u32 %v481, 2147483648
    %v494 = vor.u32 1.1754944e-38, %v493
    %v495 = vsel %vm492, %v494, %v490
    %v496 = vmul.f32 %v478, %v495
    %v497 = vadd.f32 %v496, 2.0
    %v498 = vmul.f32 %v496, %v497
    %v499 = vrsqrt.pop %v498
    %v500 = vmul.f32 %v499, %v498
    %v501 = vmul.f32 %v500, %v499
    %v502 = vmul.f32 0.5, %v501
    %v503 = vsub.f32 1.5, %v502
    %v504 = vmul.f32 %v499, %v503
    %v505 = vmul.f32 %v498, %v504
    %vm506 = vcmp.eq.f32.partialorder %v498, inf
    %v507 = vsel %vm506, %v498, %v505
    %vm508 = vcmp.eq.f32.partialorder %v498, 0.0
    %v509 = vand.u32 %v498, 2147483648
    %v510 = vsel %vm508, %v509, %v507
    %v511 = vadd.f32 %v496, %v510
    %v512 = vadd.f32 %v511, 1.0
    %v513 = vlog2.pop %v512
    %v514 = vmul.f32 %v513, 0.6931472
    %v515 = vsub.f32 0.0, %v514
    %v516 = vmul.f32 %v515, 1.442695
    %v517 = vpow.pop %v516
    %v518 = vadd.f32 %v467, %v517
    %v519 = vld [vmem:[#allocation3 + $0x40] sm:$0xff]
    %v520 = vmul.f32 %v519, %v519
    %v521 = vsel %vm107, %v520, 0.0
    %522 = vadd.xlane.f32.xlu0 %v521
    %v523 = vpop.xlane.xlu0 %522
    %v524 = vsub.f32 %v105, %v519
    %v525 = vmul.f32 %v524, %v524
    %v526 = vsel %vm107, %v525, 0.0
    %527 = vadd.xlane.f32.xlu0 %v526
    %v528 = vpop.xlane.xlu0 %527
    %v529 = vmul.f32 %v528, 2.0
    %v530 = vsub.f32 1.0, %v523
    %v531 = vmax.f32 %v530, 1e-07
    %v532 = vmul.f32 %v112, %v531
    %v533 = vrcp.pop %v532
    %v534 = vmul.f32 %v532, %v533
    %v535 = vsub.f32 1.0, %v534
    %v536 = vmul.f32 %v533, %v535
    %v537 = vadd.f32 %v533, %v536
    %vm538 = vweird.f32 %v532
    %vm539 = vweird.f32 %v533
    %vm540 = vmor %vm538, %vm539
    %v541 = vsel %vm540, %v533, %v537
    %v542 = vand.u32 2147483647, %v532
    %vm543 = vcmp.eq.f32.partialorder %v542, 8.507059e+37
    %v544 = vand.u32 %v532, 2147483648
    %v545 = vor.u32 1.1754944e-38, %v544
    %v546 = vsel %vm543, %v545, %v541
    %v547 = vmul.f32 %v529, %v546
    %v548 = vadd.f32 %v547, 2.0
    %v549 = vmul.f32 %v547, %v548
    %v550 = vrsqrt.pop %v549
    %v551 = vmul.f32 %v550, %v549
    %v552 = vmul.f32 %v551, %v550
    %v553 = vmul.f32 0.5, %v552
    %v554 = vsub.f32 1.5, %v553
    %v555 = vmul.f32 %v550, %v554
    %v556 = vmul.f32 %v549, %v555
    %vm557 = vcmp.eq.f32.partialorder %v549, inf
    %v558 = vsel %vm557, %v549, %v556
    %vm559 = vcmp.eq.f32.partialorder %v549, 0.0
    %v560 = vand.u32 %v549, 2147483648
    %v561 = vsel %vm559, %v560, %v558
    %v562 = vadd.f32 %v547, %v561
    %v563 = vadd.f32 %v562, 1.0
    %v564 = vlog2.pop %v563
    %v565 = vmul.f32 %v564, 0.6931472
    %v566 = vsub.f32 0.0, %v565
    %v567 = vmul.f32 %v566, 1.442695
    %v568 = vpow.pop %v567
    %v569 = vadd.f32 %v518, %v568
    %v570 = vrcp.pop %v569
    %v571 = vmul.f32 %v162, %v570
    %572 = vst [vmem:[#allocation8] sm:$0xff] %v571
    // Predicated region
    $region13: #{tpu_custom_call.1} parent=1 // pred_check
      _
    $region14: #{tpu_custom_call.1} parent=1 // pred_check_branch
      %574 = sbr.rel (0) target = $region16
    $region15: #{tpu_custom_call.1} parent=1 // pred_region
      %576 = vsyncadd [#allocation9], 0
      %s578 = sshll.u32 [#allocation8], 4
      %s579 = int_to_ptr.vmem [resolvable:$true] %s578
      %s580 = sshll.u32 %s4, 4
      %s581 = int_to_ptr.hbm [resolvable:$true] %s580
      %583 = dma.vmem_to_hbm [thread:$0]  %s579, 128, %s581, [#allocation9]
    $region16: #{tpu_custom_call.1} parent=1 // pred_fallthru
      _
    // Predicated region
    $region17: #{tpu_custom_call.1} parent=1 // pred_check
      _
    $region18: #{tpu_custom_call.1} parent=1 // pred_check_branch
      %585 = sbr.rel (0) target = $region20
    $region19: #{tpu_custom_call.1} parent=1 // pred_region
      %587 = dma.done [#allocation9], 128
    $region20: #{tpu_custom_call.1} parent=1 // pred_fallthru
      _
    %588 = vsyncpa [#allocation9], 1

</llo_original>
